<compile_context>
chip_gen: v7x
topology: tpu7x:2x2x1
jax: 0.10.0
libtpu: 0.0.40
codegen_flags: <defaults>
</compile_context>

<pallas_src>
import functools
import math

import jax
import jax.numpy as jnp
from jax.experimental import pallas as pl
from jax.experimental.pallas import tpu as pltpu

_LANE = 128
_SUBLANE = 8
_EPS = 1e-7
# Budget for all pipelined buffers (in + out, double-buffered => 4x block bytes).
_VMEM_BUDGET = 12 * 1024 * 1024
_VMEM_LIMIT = 32 * 1024 * 1024  # safe on v5e/v6e/v7x


def _norm_f32(x_f32, axis, power):
    if power == 2:
        return jnp.sqrt(jnp.sum(x_f32 * x_f32, axis=axis, keepdims=True))
    # TODO(synk): for odd `power` with negative channel sums this yields NaN, which
    # matches the literal PyTorch formula pow(sum, 1/p).
    return jnp.power(
        jnp.sum(jnp.power(x_f32, power), axis=axis, keepdims=True), 1.0 / power)


def _normalize_nchw_kernel(x_ref, o_ref, *, power):
    # x_ref / o_ref: (TILE_B, C, TILE_HW). Reduce over channels (axis=1) in f32.
    x = x_ref[...].astype(jnp.float32)
    norm = _norm_f32(x, 1, power)
    # One reciprocal per spatial column, then a broadcast VPU multiply.
    inv = pl.reciprocal(norm + _EPS, approx=False)
    o_ref[...] = (x * inv).astype(o_ref.dtype)


def _normalize_rows_kernel(x_ref, o_ref, *, power):
    # x_ref / o_ref: (TILE_B, C). 2-D path: C sits on the lane axis, reduce over it.
    x = x_ref[...].astype(jnp.float32)
    norm = _norm_f32(x, -1, power)
    inv = pl.reciprocal(norm + _EPS, approx=False)
    o_ref[...] = (x * inv).astype(o_ref.dtype)


def _round_up(n, m):
    return ((n + m - 1) // m) * m


def _largest_divisor_leq(n, cap):
    cap = max(1, min(n, cap))
    for d in range(cap, 0, -1):
        if n % d == 0:
            return d
    return 1


def _pick_hw_tile(hw_pad, c, itemsize):
    # Largest 128-multiple tile (targeting 512-2048 lanes) dividing hw_pad that keeps
    # 2 arrays x 2 double-buffers within the VMEM budget.
    for t in (2048, 1024, 512, 256, 128):
        if hw_pad % t == 0 and 4 * c * t * itemsize <= _VMEM_BUDGET:
            return t
    return 128 if hw_pad % 128 == 0 else hw_pad


def _pick_batch_tile(b, c, tile_hw, hw_pad, itemsize):
    if tile_hw != hw_pad:
        return 1  # spatial tiling already provides enough work per grid step
    per_b = c * tile_hw * itemsize
    cap = max(1, _VMEM_BUDGET // (4 * per_b))
    return _largest_divisor_leq(b, cap)


def _pick_row_tile(b_pad, c, itemsize):
    if 4 * b_pad * c * itemsize <= _VMEM_BUDGET:
        return b_pad
    for t in (2048, 1024, 512, 256, 128, 64, 32, 16, 8):
        if t <= b_pad and b_pad % t == 0 and 4 * t * c * itemsize <= _VMEM_BUDGET:
            return t
    return _SUBLANE  # b_pad is always a multiple of 8


def normalize(x: jax.Array, power: int = 2) -> jax.Array:
    """Pallas implementation of Normalize.forward for (B, C, ...) or (B, C) inputs."""
    if x.ndim < 2:
        raise ValueError("normalize expects at least 2 dims (B, C, ...)")
    itemsize = jnp.dtype(x.dtype).itemsize
    kernel_params = pltpu.CompilerParams

    # ---------------- 2-D (B, C) path: lane-dense, reduce over the last axis.
    if x.ndim == 2:
        b, c = x.shape
        b_pad = _round_up(b, _SUBLANE)
        xp = jnp.pad(x, ((0, b_pad - b), (0, 0))) if b_pad != b else x
        tile_b = _pick_row_tile(b_pad, c, itemsize)
        n = b_pad * c
        out = pl.pallas_call(
            functools.partial(_normalize_rows_kernel, power=power),
            out_shape=jax.ShapeDtypeStruct((b_pad, c), x.dtype),
            grid_spec=pltpu.PrefetchScalarGridSpec(
                num_scalar_prefetch=0,
                grid=(b_pad // tile_b,),
                in_specs=[pl.BlockSpec((tile_b, c), lambda i: (i, 0))],
                out_specs=pl.BlockSpec((tile_b, c), lambda i: (i, 0)),
            ),
            compiler_params=kernel_params(
                dimension_semantics=("parallel",),
                vmem_limit_bytes=_VMEM_LIMIT),
            cost_estimate=pl.CostEstimate(
                flops=3 * n,
                transcendentals=2 * b_pad,
                bytes_accessed=2 * n * itemsize),
        )(xp)
        return out[:b] if b_pad != b else out

    # ---------------- N-D (B, C, spatial...) path: reduce over axis 1.
    orig_shape = x.shape
    b, c = x.shape[0], x.shape[1]
    hw = math.prod(x.shape[2:])
    x3 = x.reshape(b, c, hw)

    hw_pad = _round_up(hw, _LANE)
    if hw_pad != hw:
        # Zero padding is safe: 0 / (0 + eps) = 0, sliced off after the kernel.
        x3 = jnp.pad(x3, ((0, 0), (0, 0), (0, hw_pad - hw)))

    tile_hw = _pick_hw_tile(hw_pad, c, itemsize)
    tile_b = _pick_batch_tile(b, c, tile_hw, hw_pad, itemsize)

    n = b * c * hw_pad
    out3 = pl.pallas_call(
        functools.partial(_normalize_nchw_kernel, power=power),
        out_shape=jax.ShapeDtypeStruct((b, c, hw_pad), x.dtype),
        grid_spec=pltpu.PrefetchScalarGridSpec(
            num_scalar_prefetch=0,
            grid=(b // tile_b, hw_pad // tile_hw),
            in_specs=[pl.BlockSpec((tile_b, c, tile_hw), lambda i, j: (i, 0, j))],
            out_specs=pl.BlockSpec((tile_b, c, tile_hw), lambda i, j: (i, 0, j)),
        ),
        compiler_params=kernel_params(
            dimension_semantics=("parallel", "parallel"),
            vmem_limit_bytes=_VMEM_LIMIT),
        cost_estimate=pl.CostEstimate(
            flops=3 * n,
            transcendentals=2 * b * hw_pad,
            bytes_accessed=2 * n * itemsize),
    )(x3)

    if hw_pad != hw:
        out3 = out3[:, :, :hw]
    return out3.reshape(orig_shape)


if __name__ == "__main__":
    key = jax.random.PRNGKey(0)
    k1, k2 = jax.random.split(key)

    # NCHW case (typical use of Normalize in models/networks.py).
    x = jax.random.normal(k1, (2, 4, 16, 16), dtype=jnp.float32)
    out = jax.block_until_ready(normalize(x, power=2))
    norm = jnp.power(jnp.sum(jnp.power(x, 2), axis=1, keepdims=True), 0.5)
    ref = x / (norm + 1e-7)
    assert out.shape == x.shape and out.dtype == x.dtype
    assert jnp.allclose(out, ref, atol=1e-5, rtol=1e-5)

    # 2-D (B, C) feature-vector case: lane-dense path.
    y = jax.random.normal(k2, (16, 32), dtype=jnp.float32)
    out2 = jax.block_until_ready(normalize(y, power=2))
    norm2 = jnp.power(jnp.sum(jnp.power(y, 2), axis=1, keepdims=True), 0.5)
    ref2 = y / (norm2 + 1e-7)
    assert out2.shape == y.shape and out2.dtype == y.dtype
    assert jnp.allclose(out2, ref2, atol=1e-5, rtol=1e-5)

    print("KERNEL_OK")
</pallas_src>

<mosaic_0001>
module attributes {stable_mosaic.version = 11 : i64} {
  func.func @_normalize_nchw_kernel(%arg0: i32, %arg1: i32, %arg2: memref<2x4x256xf32, #tpu.memory_space<vmem>>, %arg3: memref<2x4x256xf32, #tpu.memory_space<vmem>>) attributes {dimension_semantics = [#tpu.dimension_semantics<parallel>, #tpu.dimension_semantics<parallel>], iteration_bounds = array<i64: 1, 1>, scalar_prefetch = 0 : i64, scratch_operands = 0 : i64, tpu.core_type = #tpu.core_type<tc>, window_params = [{transform_indices = @transform_0, window_bounds = array<i64: 2, 4, 256>}, {transform_indices = @transform_1, window_bounds = array<i64: 2, 4, 256>}]} {
    %c0 = arith.constant 0 : index
    %c0_0 = arith.constant 0 : index
    %c0_1 = arith.constant 0 : index
    %0 = vector.load %arg2[%c0, %c0_0, %c0_1] : memref<2x4x256xf32, #tpu.memory_space<vmem>>, vector<2x4x256xf32>
    %1 = arith.mulf %0, %0 : vector<2x4x256xf32>
    %cst = arith.constant dense<0.000000e+00> : vector<2x256xf32>
    %2 = vector.multi_reduction <add>, %1, %cst [1] : vector<2x4x256xf32> to vector<2x256xf32>
    %3 = vector.shape_cast %2 : vector<2x256xf32> to vector<2x1x256xf32>
    %4 = math.sqrt %3 : vector<2x1x256xf32>
    %cst_2 = arith.constant 1.000000e-07 : f32
    %5 = vector.broadcast %cst_2 : f32 to vector<2x1x256xf32>
    %6 = arith.addf %4, %5 : vector<2x1x256xf32>
    %7 = tpu.reciprocal %6 : vector<2x1x256xf32> -> vector<2x1x256xf32>
    %8 = vector.broadcast %7 : vector<2x1x256xf32> to vector<2x4x256xf32>
    %9 = arith.mulf %0, %8 : vector<2x4x256xf32>
    %c0_3 = arith.constant 0 : index
    %c0_4 = arith.constant 0 : index
    %c0_5 = arith.constant 0 : index
    %10 = vector.load %arg3[%c0_3, %c0_4, %c0_5] : memref<2x4x256xf32, #tpu.memory_space<vmem>>, vector<2x4x256xf32>
    tpu.vector_store %arg3[%c0_3, %c0_4, %c0_5], %9 {strides = array<i32>} : memref<2x4x256xf32, #tpu.memory_space<vmem>>, vector<2x4x256xf32>,
    return
  }
  func.func @transform_0(%arg0: i32, %arg1: i32) -> (i32, i32, i32) {
    %c0_i32 = arith.constant 0 : i32
    %c0_i32_0 = arith.constant 0 : i32
    return %arg0, %c0_i32, %arg1 : i32, i32, i32
  }
  func.func @transform_1(%arg0: i32, %arg1: i32) -> (i32, i32, i32) {
    %c0_i32 = arith.constant 0 : i32
    %c0_i32_0 = arith.constant 0 : i32
    return %arg0, %c0_i32, %arg1 : i32, i32, i32
  }
}

</mosaic_0001>

<llo_original>
// kernel: tpu_custom_call.1
$region0: #{tpu_custom_call.1}
  #allocation0 [shape = 'u32[]', space=smem, size = 0x4, offset = 0x4, fixed_abs, tag = 'smem constant byte address 0x4 - core index']
  #allocation1 [shape = 'u32[144,128]{1,0:T(1,128)}', space=vmem, size = 0x12000, scoped, tag = 'internal scratch']
  %s0 = inlined_call_operand.hbm [shape: f32[2,4,256], index: 0, kind: input, shape index: {}]
  %s1 = inlined_call_operand.hbm [shape: f32[2,4,256], index: 1, kind: output, shape index: {}]
  %s2 = sld [smem:[#allocation0]]
  $region18: #{tpu_custom_call.1} parent=0
    _
  %s4 = ssub.s32 1, %s2
  %s5 = scalar_select 0, %s4, %s2
  $region1: #{tpu_custom_call.1} parent=0
    #allocation2 [shape = 'u8[8192]{0}', space=vmem, size = 0x2000, scoped, tag = 'input window, operand 0, single buffered']
    #allocation3 [shape = 's32[1]{0}', space=sflag, size = 0x4, scoped, tag = 'scoped memory for tpu_custom_call.1']
    #allocation4 [shape = 's32[1]{0}', space=sflag, size = 0x4, scoped, tag = 'scoped memory for tpu_custom_call.1']
    #allocation5 [shape = 'u8[8192]{0}', space=vmem, size = 0x2000, scoped, tag = 'output window, operand 0, single buffered']
    %6 = vsyncpa [#allocation3], 0
    %7 = vsyncpa [#allocation4], 0
    // Predicated region
    $region2: #{tpu_custom_call.1} parent=1 // pred_check
      _
    $region3: #{tpu_custom_call.1} parent=1 // pred_check_branch
      %9 = sbr.rel (0) target = $region5
    $region4: #{tpu_custom_call.1} parent=1 // pred_region
      %s11 = ssub.s32 256, 256
      %12 = vsyncadd [#allocation3], %s11
      %s13 = sshll.u32 [#allocation2], 4
      %s14 = int_to_ptr.vmem [resolvable:$true] %s13
      %19 = dma.hbm_to_vmem [thread:$0]  %s0, 256, %s14, [#allocation3], 128, 128, 8
    $region5: #{tpu_custom_call.1} parent=1 // pred_fallthru
      _
    // Predicated region
    $region6: #{tpu_custom_call.1} parent=1 // pred_check
      _
    $region7: #{tpu_custom_call.1} parent=1 // pred_check_branch
      %21 = sbr.rel (0) target = $region9
    $region8: #{tpu_custom_call.1} parent=1 // pred_region
      %22 = dma.done [#allocation3], 256
    $region9: #{tpu_custom_call.1} parent=1 // pred_fallthru
      _
    %v23 = vld [vmem:[#allocation2] sm:$0xff]
    %v24 = vld [vmem:[#allocation2 + $0x8] sm:$0xff]
    %v25 = vmul.f32 %v23, %v23
    %v26 = vmul.f32 %v24, %v24
    %v29 = vcombine.high %v25, %v25
    %v30 = vcombine.high %v26, %v26
    %vm33 = vcmask 1043456
    %v34 = vsel %vm33, %v25, 0.0
    %v35 = vrot.slane %v34, 4
    %v36 = vadd.f32 %v34, %v35
    %v37 = vrot.slane %v36, 2
    %v38 = vadd.f32 %v36, %v37
    %v39 = vrot.slane %v38, 1
    %v40 = vadd.f32 %v38, %v39
    %v41 = vsel %vm33, %v29, 0.0
    %v42 = vrot.slane %v41, 4
    %v43 = vadd.f32 %v41, %v42
    %v44 = vrot.slane %v43, 2
    %v45 = vadd.f32 %v43, %v44
    %v46 = vrot.slane %v45, 1
    %v47 = vadd.f32 %v45, %v46
    %v48 = vsel %vm33, %v26, 0.0
    %v49 = vrot.slane %v48, 4
    %v50 = vadd.f32 %v48, %v49
    %v51 = vrot.slane %v50, 2
    %v52 = vadd.f32 %v50, %v51
    %v53 = vrot.slane %v52, 1
    %v54 = vadd.f32 %v52, %v53
    %v55 = vsel %vm33, %v30, 0.0
    %v56 = vrot.slane %v55, 4
    %v57 = vadd.f32 %v55, %v56
    %v58 = vrot.slane %v57, 2
    %v59 = vadd.f32 %v57, %v58
    %v60 = vrot.slane %v59, 1
    %v61 = vadd.f32 %v59, %v60
    %v62 = vrsqrt.pop %v40
    %v63 = vmul.f32 %v40, %v62
    %vm64 = vcmp.eq.f32.partialorder %v40, inf
    %v65 = vsel %vm64, %v40, %v63
    %vm66 = vcmp.eq.f32.partialorder %v40, 0.0
    %v67 = vand.u32 %v40, 2147483648
    %v68 = vsel %vm66, %v67, %v65
    %v69 = vrsqrt.pop %v47
    %v70 = vmul.f32 %v47, %v69
    %vm71 = vcmp.eq.f32.partialorder %v47, inf
    %v72 = vsel %vm71, %v47, %v70
    %vm73 = vcmp.eq.f32.partialorder %v47, 0.0
    %v74 = vand.u32 %v47, 2147483648
    %v75 = vsel %vm73, %v74, %v72
    %v76 = vrsqrt.pop %v54
    %v77 = vmul.f32 %v54, %v76
    %vm78 = vcmp.eq.f32.partialorder %v54, inf
    %v79 = vsel %vm78, %v54, %v77
    %vm80 = vcmp.eq.f32.partialorder %v54, 0.0
    %v81 = vand.u32 %v54, 2147483648
    %v82 = vsel %vm80, %v81, %v79
    %v83 = vrsqrt.pop %v61
    %v84 = vmul.f32 %v61, %v83
    %vm85 = vcmp.eq.f32.partialorder %v61, inf
    %v86 = vsel %vm85, %v61, %v84
    %vm87 = vcmp.eq.f32.partialorder %v61, 0.0
    %v88 = vand.u32 %v61, 2147483648
    %v89 = vsel %vm87, %v88, %v86
    %v90 = vadd.f32 %v68, 1e-07
    %v91 = vadd.f32 %v75, 1e-07
    %v92 = vadd.f32 %v82, 1e-07
    %v93 = vadd.f32 %v89, 1e-07
    %v94 = vrcp.pop %v90
    %v95 = vrcp.pop %v91
    %v96 = vrcp.pop %v92
    %v97 = vrcp.pop %v93
    %v102 = vcombine.low %v94, %v95
    %v103 = vcombine.low %v96, %v97
    %v106 = vmul.f32 %v23, %v102
    %v107 = vmul.f32 %v24, %v103
    %108 = vst [vmem:[#allocation5] sm:$0xff] %v106
    %109 = vst [vmem:[#allocation5 + $0x8] sm:$0xff] %v107
    // Predicated region
    $region10: #{tpu_custom_call.1} parent=1 // pred_check
      _
    $region11: #{tpu_custom_call.1} parent=1 // pred_check_branch
      %111 = sbr.rel (0) target = $region13
    $region12: #{tpu_custom_call.1} parent=1 // pred_region
      %s113 = ssub.s32 256, 256
      %114 = vsyncadd [#allocation4], %s113
      %s115 = sshll.u32 [#allocation5], 4
      %s116 = int_to_ptr.vmem [resolvable:$true] %s115
      %121 = dma.vmem_to_hbm [thread:$0]  %s116, 256, %s1, [#allocation4], 128, 128, 8
    $region13: #{tpu_custom_call.1} parent=1 // pred_fallthru
      _
    // Predicated region
    $region14: #{tpu_custom_call.1} parent=1 // pred_check
      _
    $region15: #{tpu_custom_call.1} parent=1 // pred_check_branch
      %123 = sbr.rel (0) target = $region17
    $region16: #{tpu_custom_call.1} parent=1 // pred_region
      %124 = dma.done [#allocation4], 256
    $region17: #{tpu_custom_call.1} parent=1 // pred_fallthru
      _
    %125 = vsyncpa [#allocation3], 1
    %126 = vsyncpa [#allocation4], 1

</llo_original>
